<compile_context>
chip_gen: v6e
topology: v6e:2x2x1
jax: 0.10.0
libtpu: 0.0.40
codegen_flags: <defaults>
</compile_context>

<pallas_src>
import jax
import jax.numpy as jnp
from jax.experimental import pallas as pl
from jax.experimental.pallas import tpu as pltpu


def _round_up(n, m):
    return ((n + m - 1) // m) * m


def _mlp_kernel(x_ref, w1_ref, b1_ref, w2_ref, b2_ref, o_ref):
    # x:(TB,H) f32, w1:(H,Hp) bf16, b1:(1,Hp) f32, w2:(Hp,Op) bf16, b2:(1,Op) f32
    x = x_ref[...].astype(jnp.bfloat16)                                # in-kernel cast (VPU)
    h = jnp.dot(x, w1_ref[...], preferred_element_type=jnp.float32)   # MXU, f32 acc
    h = jnp.maximum(h + b1_ref[...], 0.0)                             # bias + ReLU (VPU)
    y = jnp.dot(h.astype(jnp.bfloat16), w2_ref[...],
                preferred_element_type=jnp.float32)                   # MXU, f32 acc
    o_ref[...] = (y + b2_ref[...]).astype(o_ref.dtype)


def prepare_params(params):
    """One-time weight prep: transpose to (in, out), zero-pad to lane multiples, cast to bf16."""
    w1, b1, w2, b2 = params["w1"], params["b1"], params["w2"], params["b2"]
    hidden = w1.shape[0]                 # size * outsize (e.g. 400)
    outsize = w2.shape[0]                # e.g. 50
    hp = _round_up(hidden, 128)          # 400 -> 512 (layer-1 out / layer-2 in)
    op = _round_up(outsize, 128)         # 50 -> 128 (lane-dense output)
    # NOTE: layer-1 K dim stays 400 (full array dim) and layer-2 N stays 128 — the MXU
    # pads K internally and extra N padding would only add output DMA bytes.

    w1_t = jnp.transpose(w1).astype(jnp.float32)                       # (H, H) in-major
    w1_t = jnp.pad(w1_t, ((0, 0), (0, hp - hidden))).astype(jnp.bfloat16)   # (H, Hp)
    b1_row = jnp.pad(b1.reshape(1, hidden),
                     ((0, 0), (0, hp - hidden))).astype(jnp.float32)        # (1, Hp)

    w2_t = jnp.transpose(w2).astype(jnp.float32)                        # (H, O)
    w2_t = jnp.pad(w2_t, ((0, hp - hidden), (0, op - outsize))).astype(jnp.bfloat16)  # (Hp, Op)
    b2_row = jnp.pad(b2.reshape(1, outsize),
                     ((0, 0), (0, op - outsize))).astype(jnp.float32)        # (1, Op)

    return {"w1_t": w1_t, "b1_row": b1_row, "w2_t": w2_t, "b2_row": b2_row,
            "hidden": hidden, "outsize": outsize}


def phase_nn_forward(x, prepped, *, tile_b=2048):
    """x: (batch, size, outsize) float. Returns logits (batch, outsize) float32."""
    batch = x.shape[0]
    hidden = prepped["hidden"]
    outsize = prepped["outsize"]
    w1_t, b1_row = prepped["w1_t"], prepped["b1_row"]
    w2_t, b2_row = prepped["w2_t"], prepped["b2_row"]
    hp = w1_t.shape[1]
    op = w2_t.shape[1]

    # nn.Flatten: row-major flatten of everything but batch. Stays f32 — the bf16 cast
    # happens inside the kernel so activations are only read once from HBM.
    x2d = x.reshape(batch, -1)                                          # (batch, hidden) f32

    # Batch tile: big enough to amortize per-grid-step overhead, rounded to 8 sublanes,
    # never larger than needed for a single block.  Ragged last block handled by Pallas
    # (no wrapper-side pad pass); OOB rows are garbage but row-independent and dropped.
    tb = min(tile_b, _round_up(batch, 8))
    grid = (pl.cdiv(batch, tb),)

    out = pl.pallas_call(
        _mlp_kernel,
        out_shape=jax.ShapeDtypeStruct((batch, op), jnp.float32),
        grid=grid,
        in_specs=[
            pl.BlockSpec((tb, hidden), lambda i: (i, 0)),   # activation tiles stream (f32)
            pl.BlockSpec((hidden, hp), lambda i: (0, 0)),   # weights VMEM-resident (bf16)
            pl.BlockSpec((1, hp), lambda i: (0, 0)),
            pl.BlockSpec((hp, op), lambda i: (0, 0)),
            pl.BlockSpec((1, op), lambda i: (0, 0)),
        ],
        out_specs=pl.BlockSpec((tb, op), lambda i: (i, 0)), # lane-dense (128-wide) output
        compiler_params=pltpu.CompilerParams(
            dimension_semantics=("parallel",),
            # f32 input double-buffer + f32 hidden intermediate at TB=2048 (~13 MiB total)
            # overflow v5e's 16 MiB default scoped VMEM; 32 MiB fits all generations.
            vmem_limit_bytes=32 * 1024 * 1024,
        ),
    )(x2d, w1_t, b1_row, w2_t, b2_row)

    return out[:, :outsize]


def init_params(key, size=8, outsize=50):
    """Deterministic synthetic init matching the torch module's parameter shapes."""
    hidden = size * outsize
    k1, k2, k3, k4 = jax.random.split(key, 4)
    bound1 = 1.0 / jnp.sqrt(hidden)
    return {
        "w1": jax.random.uniform(k1, (hidden, hidden), jnp.float32, -bound1, bound1),
        "b1": jax.random.uniform(k2, (hidden,), jnp.float32, -bound1, bound1),
        "w2": jax.random.uniform(k3, (outsize, hidden), jnp.float32, -bound1, bound1),
        "b2": jax.random.uniform(k4, (outsize,), jnp.float32, -bound1, bound1),
    }


def _reference(x, params):
    x2d = x.reshape(x.shape[0], -1)
    h = jnp.maximum(x2d @ params["w1"].T + params["b1"], 0.0)
    return h @ params["w2"].T + params["b2"]


if __name__ == "__main__":
    size, outsize = 8, 50
    key = jax.random.PRNGKey(0)
    kx, kp, kx2 = jax.random.split(key, 3)

    params = init_params(kp, size=size, outsize=outsize)
    prepped = prepare_params(params)   # one-time weight prep (transpose/pad/bf16)

    # Tiny-batch path (single 8-row block, launch-latency dominated).
    batch = 2
    x = jax.random.normal(kx, (batch, size, outsize), jnp.float32)
    out = jax.block_until_ready(phase_nn_forward(x, prepped))
    ref = _reference(x, params)
    assert out.shape == (batch, outsize)
    assert jnp.allclose(out, ref, atol=2e-2, rtol=2e-2), "mismatch vs reference (small batch)"

    # Larger ragged batch exercising the cdiv-grid / partial-block path.
    batch2 = 700
    x2 = jax.random.normal(kx2, (batch2, size, outsize), jnp.float32)
    out2 = jax.block_until_ready(phase_nn_forward(x2, prepped))
    ref2 = _reference(x2, params)
    assert out2.shape == (batch2, outsize)
    assert jnp.allclose(out2, ref2, atol=2e-2, rtol=2e-2), "mismatch vs reference (batched)"

    print("KERNEL_OK")
</pallas_src>

<mosaic_0001>
module attributes {stable_mosaic.version = 11 : i64} {
  func.func @_mlp_kernel(%arg0: i32, %arg1: memref<8x400xf32, #tpu.memory_space<vmem>>, %arg2: memref<400x512xbf16, #tpu.memory_space<vmem>>, %arg3: memref<1x512xf32, #tpu.memory_space<vmem>>, %arg4: memref<512x128xbf16, #tpu.memory_space<vmem>>, %arg5: memref<1x128xf32, #tpu.memory_space<vmem>>, %arg6: memref<8x128xf32, #tpu.memory_space<vmem>>) attributes {dimension_semantics = [#tpu.dimension_semantics<parallel>], iteration_bounds = array<i64: 1>, scalar_prefetch = 0 : i64, scratch_operands = 0 : i64, tpu.core_type = #tpu.core_type<tc>, window_params = [{transform_indices = @transform_0, window_bounds = array<i64: 8, 400>}, {pipeline_mode = #tpu.pipeline_mode<synchronous>, transform_indices = @transform_1, window_bounds = array<i64: 400, 512>}, {pipeline_mode = #tpu.pipeline_mode<synchronous>, transform_indices = @transform_2, window_bounds = array<i64: 1, 512>}, {pipeline_mode = #tpu.pipeline_mode<synchronous>, transform_indices = @transform_3, window_bounds = array<i64: 512, 128>}, {pipeline_mode = #tpu.pipeline_mode<synchronous>, transform_indices = @transform_4, window_bounds = array<i64: 1, 128>}, {transform_indices = @transform_5, window_bounds = array<i64: 8, 128>}]} {
    %c0 = arith.constant 0 : index
    %c0_0 = arith.constant 0 : index
    %0 = vector.load %arg1[%c0, %c0_0] : memref<8x400xf32, #tpu.memory_space<vmem>>, vector<8x400xf32>
    %1 = arith.truncf %0 : vector<8x400xf32> to vector<8x400xbf16>
    %c0_1 = arith.constant 0 : index
    %c0_2 = arith.constant 0 : index
    %2 = vector.load %arg2[%c0_1, %c0_2] : memref<400x512xbf16, #tpu.memory_space<vmem>>, vector<400x512xbf16>
    %cst = arith.constant dense<0.000000e+00> : vector<8x512xf32>
    %3 = tpu.matmul %1, %2, %cst {dimension_numbers = #tpu.dot_dimension_numbers<[1], [0], [0], [1], [0, 0, 1, 1], [], []>} : vector<8x400xbf16>, vector<400x512xbf16>, vector<8x512xf32> -> vector<8x512xf32>
    %c0_3 = arith.constant 0 : index
    %c0_4 = arith.constant 0 : index
    %4 = vector.load %arg3[%c0_3, %c0_4] : memref<1x512xf32, #tpu.memory_space<vmem>>, vector<1x512xf32>
    %5 = vector.broadcast %4 : vector<1x512xf32> to vector<8x512xf32>
    %6 = arith.addf %3, %5 : vector<8x512xf32>
    %cst_5 = arith.constant 0.000000e+00 : f32
    %7 = vector.broadcast %cst_5 : f32 to vector<8x512xf32>
    %8 = arith.maximumf %6, %7 : vector<8x512xf32>
    %9 = arith.truncf %8 : vector<8x512xf32> to vector<8x512xbf16>
    %c0_6 = arith.constant 0 : index
    %c0_7 = arith.constant 0 : index
    %10 = vector.load %arg4[%c0_6, %c0_7] : memref<512x128xbf16, #tpu.memory_space<vmem>>, vector<512x128xbf16>
    %cst_8 = arith.constant dense<0.000000e+00> : vector<8x128xf32>
    %11 = tpu.matmul %9, %10, %cst_8 {dimension_numbers = #tpu.dot_dimension_numbers<[1], [0], [0], [1], [0, 0, 1, 1], [], []>} : vector<8x512xbf16>, vector<512x128xbf16>, vector<8x128xf32> -> vector<8x128xf32>
    %c0_9 = arith.constant 0 : index
    %c0_10 = arith.constant 0 : index
    %12 = vector.load %arg5[%c0_9, %c0_10] : memref<1x128xf32, #tpu.memory_space<vmem>>, vector<1x128xf32>
    %13 = vector.broadcast %12 : vector<1x128xf32> to vector<8x128xf32>
    %14 = arith.addf %11, %13 : vector<8x128xf32>
    %c0_11 = arith.constant 0 : index
    %c0_12 = arith.constant 0 : index
    %15 = vector.load %arg6[%c0_11, %c0_12] : memref<8x128xf32, #tpu.memory_space<vmem>>, vector<8x128xf32>
    tpu.vector_store %arg6[%c0_11, %c0_12], %14 {strides = array<i32>} : memref<8x128xf32, #tpu.memory_space<vmem>>, vector<8x128xf32>,
    return
  }
  func.func @transform_0(%arg0: i32) -> (i32, i32) {
    %c0_i32 = arith.constant 0 : i32
    %c0_i32_0 = arith.constant 0 : i32
    return %arg0, %c0_i32 : i32, i32
  }
  func.func @transform_1(%arg0: i32) -> (i32, i32) {
    %c0_i32 = arith.constant 0 : i32
    %c0_i32_0 = arith.constant 0 : i32
    %c0_i32_1 = arith.constant 0 : i32
    return %c0_i32, %c0_i32_0 : i32, i32
  }
  func.func @transform_2(%arg0: i32) -> (i32, i32) {
    %c0_i32 = arith.constant 0 : i32
    %c0_i32_0 = arith.constant 0 : i32
    %c0_i32_1 = arith.constant 0 : i32
    return %c0_i32, %c0_i32_0 : i32, i32
  }
  func.func @transform_3(%arg0: i32) -> (i32, i32) {
    %c0_i32 = arith.constant 0 : i32
    %c0_i32_0 = arith.constant 0 : i32
    %c0_i32_1 = arith.constant 0 : i32
    return %c0_i32, %c0_i32_0 : i32, i32
  }
  func.func @transform_4(%arg0: i32) -> (i32, i32) {
    %c0_i32 = arith.constant 0 : i32
    %c0_i32_0 = arith.constant 0 : i32
    %c0_i32_1 = arith.constant 0 : i32
    return %c0_i32, %c0_i32_0 : i32, i32
  }
  func.func @transform_5(%arg0: i32) -> (i32, i32) {
    %c0_i32 = arith.constant 0 : i32
    %c0_i32_0 = arith.constant 0 : i32
    return %arg0, %c0_i32 : i32, i32
  }
}

</mosaic_0001>

<llo_original>
// kernel: tpu_custom_call.1
$region0: #{tpu_custom_call.1}
  #allocation0 [shape = 'u32[]', space=smem, size = 0x4, offset = 0x4, fixed_abs, tag = 'smem constant byte address 0x4 - core index']
  #allocation1 [shape = 'u32[144,128]{1,0:T(1,128)}', space=vmem, size = 0x12000, scoped, tag = 'internal scratch']
  %s0 = inlined_call_operand.hbm [shape: f32[2,400], index: 0, kind: input, shape index: {}]
  %s1 = inlined_call_operand.hbm [shape: bf16[400,512], index: 1, kind: input, shape index: {}]
  %s2 = inlined_call_operand.hbm [shape: f32[1,512], index: 2, kind: input, shape index: {}]
  %s3 = inlined_call_operand.hbm [shape: bf16[512,128], index: 3, kind: input, shape index: {}]
  %s4 = inlined_call_operand.vmem [shape: f32[1,128], index: 4, kind: input, shape index: {}]
  %s5 = inlined_call_operand.hbm [shape: f32[2,128], index: 5, kind: output, shape index: {}]
  %s6 = sld [smem:[#allocation0]]
  $region46: #{tpu_custom_call.1} parent=0
    _
  %s8 = ssub.s32 1, %s6
  %s9 = scalar_select 0, %s8, %s6
  $region1: #{tpu_custom_call.1} parent=0
    #allocation2 [shape = 'u8[16384]{0}', space=vmem, size = 0x4000, scoped, tag = 'input window, operand 0, single buffered']
    #allocation3 [shape = 's32[1]{0}', space=sflag, size = 0x4, scoped, tag = 'scoped memory for tpu_custom_call.1']
    #allocation4 [shape = 's32[1]{0}', space=sflag, size = 0x4, scoped, tag = 'scoped memory for tpu_custom_call.1']
    #allocation5 [shape = 'u8[409600]{0}', space=vmem, size = 0x64000, scoped, tag = 'input window, operand 1, single buffered']
    #allocation6 [shape = 's32[1]{0}', space=sflag, size = 0x4, scoped, tag = 'scoped memory for tpu_custom_call.1']
    #allocation7 [shape = 'u8[2048]{0}', space=vmem, size = 0x800, scoped, tag = 'input window, operand 2, single buffered']
    #allocation8 [shape = 'u8[131072]{0}', space=vmem, size = 0x20000, scoped, tag = 'input window, operand 3, single buffered']
    #allocation9 [shape = 's32[1]{0}', space=sflag, size = 0x4, scoped, tag = 'scoped memory for tpu_custom_call.1']
    #allocation10 [shape = 'u8[4096]{0}', space=vmem, size = 0x1000, scoped, tag = 'output window, operand 0, single buffered']
    %10 = vsyncpa [#allocation3], 0
    %11 = vsyncpa [#allocation6], 0
    %12 = vsyncpa [#allocation9], 0
    %13 = vsyncpa [#allocation4], 0
    // Predicated region
    $region2: #{tpu_custom_call.1} parent=1 // pred_check
      _
    $region3: #{tpu_custom_call.1} parent=1 // pred_check_branch
      %15 = sbr.rel (0) target = $region5
    $region4: #{tpu_custom_call.1} parent=1 // pred_region
      %s17 = ssub.s32 512, 128
      %18 = vsyncadd [#allocation3], %s17
      %s19 = sshll.u32 [#allocation2], 4
      %s20 = int_to_ptr.vmem [resolvable:$true] %s19
      %25 = dma.hbm_to_vmem [thread:$0]  %s0, 128, %s20, [#allocation3], 128, 128, 8
    $region5: #{tpu_custom_call.1} parent=1 // pred_fallthru
      _
    // Predicated region
    $region6: #{tpu_custom_call.1} parent=1 // pred_check
      _
    $region7: #{tpu_custom_call.1} parent=1 // pred_check_branch
      %27 = sbr.rel (0) target = $region9
    $region8: #{tpu_custom_call.1} parent=1 // pred_region
      %s29 = ssub.s32 12800, 12800
      %30 = vsyncadd [#allocation6], %s29
      %s31 = sshll.u32 [#allocation5], 4
      %s32 = int_to_ptr.vmem [resolvable:$true] %s31
      %37 = dma.hbm_to_vmem [thread:$0]  %s1, 12800, %s32, [#allocation6], 256, 256, 16
    $region9: #{tpu_custom_call.1} parent=1 // pred_fallthru
      _
    // Predicated region
    $region10: #{tpu_custom_call.1} parent=1 // pred_check
      _
    $region11: #{tpu_custom_call.1} parent=1 // pred_check_branch
      %39 = sbr.rel (0) target = $region13
    $region12: #{tpu_custom_call.1} parent=1 // pred_region
      %s41 = ssub.s32 64, 64
      %42 = vsyncadd [#allocation6], %s41
      %s44 = sshll.u32 [#allocation7], 4
      %s45 = int_to_ptr.vmem [resolvable:$true] %s44
      %47 = dma.hbm_to_vmem [thread:$0]  %s2, 64, %s45, [#allocation6]
    $region13: #{tpu_custom_call.1} parent=1 // pred_fallthru
      _
    // Predicated region
    $region14: #{tpu_custom_call.1} parent=1 // pred_check
      _
    $region15: #{tpu_custom_call.1} parent=1 // pred_check_branch
      %49 = sbr.rel (0) target = $region17
    $region16: #{tpu_custom_call.1} parent=1 // pred_region
      %s51 = ssub.s32 4096, 4096
      %52 = vsyncadd [#allocation9], %s51
      %s53 = sshll.u32 [#allocation8], 4
      %s54 = int_to_ptr.vmem [resolvable:$true] %s53
      %59 = dma.hbm_to_vmem [thread:$0]  %s3, 4096, %s54, [#allocation9], 64, 64, 4
    $region17: #{tpu_custom_call.1} parent=1 // pred_fallthru
      _
    // Predicated region
    $region18: #{tpu_custom_call.1} parent=1 // pred_check
      _
    $region19: #{tpu_custom_call.1} parent=1 // pred_check_branch
      %61 = sbr.rel (0) target = $region21
    $region20: #{tpu_custom_call.1} parent=1 // pred_region
      _
    $region21: #{tpu_custom_call.1} parent=1 // pred_fallthru
      _
    // Predicated region
    $region22: #{tpu_custom_call.1} parent=1 // pred_check
      _
    $region23: #{tpu_custom_call.1} parent=1 // pred_check_branch
      %63 = sbr.rel (0) target = $region25
    $region24: #{tpu_custom_call.1} parent=1 // pred_region
      %64 = dma.done [#allocation3], 512
    $region25: #{tpu_custom_call.1} parent=1 // pred_fallthru
      _
    // Predicated region
    $region26: #{tpu_custom_call.1} parent=1 // pred_check
      _
    $region27: #{tpu_custom_call.1} parent=1 // pred_check_branch
      %66 = sbr.rel (0) target = $region29
    $region28: #{tpu_custom_call.1} parent=1 // pred_region
      %67 = dma.done [#allocation6], 12800
    $region29: #{tpu_custom_call.1} parent=1 // pred_fallthru
      _
    // Predicated region
    $region30: #{tpu_custom_call.1} parent=1 // pred_check
      _
    $region31: #{tpu_custom_call.1} parent=1 // pred_check_branch
      %69 = sbr.rel (0) target = $region33
    $region32: #{tpu_custom_call.1} parent=1 // pred_region
      %70 = dma.done [#allocation6], 64
    $region33: #{tpu_custom_call.1} parent=1 // pred_fallthru
      _
    // Predicated region
    $region34: #{tpu_custom_call.1} parent=1 // pred_check
      _
    $region35: #{tpu_custom_call.1} parent=1 // pred_check_branch
      %72 = sbr.rel (0) target = $region37
    $region36: #{tpu_custom_call.1} parent=1 // pred_region
      %73 = dma.done [#allocation9], 4096
    $region37: #{tpu_custom_call.1} parent=1 // pred_fallthru
      _
    %v75 = vld [vmem:[#allocation2] sm:$0xff]
    %v76 = vld [vmem:[#allocation2 + $0x8] sm:$0xff]
    %v77 = vld [vmem:[#allocation2 + $0x10] sm:$0xff]
    %v78 = vld [vmem:[#allocation2 + $0x18] sm:$0xff]
    %v83 = vcombine.low %v75, %v76
    %v84 = vcombine.high %v75, %v76
    %v85 = vcombine.low %v77, %v78
    %v86 = vcombine.high %v77, %v78
    %v88 = vunpack.c.l.s4 1983009808
    %v89 = vunpack.c.0.s8 %v88
    %v90 = vlaneseq
    %v91 = vshrl.u32 %v90, 7
    %v92 = vsub.s32 %v89, %v91
    %v93 = vrot.slane %v83, %v92
    %v95 = vunpack.c.l.s4 1983009808
    %v96 = vunpack.c.0.s8 %v95
    %v97 = vlaneseq
    %v98 = vshrl.u32 %v97, 7
    %v99 = vsub.s32 %v96, %v98
    %v100 = vrot.slane %v84, %v99
    %v102 = vunpack.c.l.s4 1983009808
    %v103 = vunpack.c.0.s8 %v102
    %v104 = vlaneseq
    %v105 = vshrl.u32 %v104, 7
    %v106 = vsub.s32 %v103, %v105
    %v107 = vrot.slane %v85, %v106
    %v109 = vunpack.c.l.s4 1983009808
    %v110 = vunpack.c.0.s8 %v109
    %v111 = vlaneseq
    %v112 = vshrl.u32 %v111, 7
    %v113 = vsub.s32 %v110, %v112
    %v114 = vrot.slane %v86, %v113
    %v115 = vcombine.low %v93, %v107
    %v116 = vcombine.high %v93, %v107
    %v117 = vcombine.low %v100, %v114
    %v118 = vcombine.high %v100, %v114
    %v123 = vpack.c.bf16 %v115, %v115
    %v124 = vpack.c.bf16 %v116, %v116
    %v125 = vpack.c.bf16 %v117, %v117
    %v126 = vpack.c.bf16 %v118, %v118
    %v127 = vld [vmem:[#allocation5] sm:$0xff]
    %v128 = vld [vmem:[#allocation5 + $0x8] sm:$0xff]
    %v129 = vld [vmem:[#allocation5 + $0x10] sm:$0xff]
    %v130 = vld [vmem:[#allocation5 + $0x18] sm:$0xff]
    %v131 = vld [vmem:[#allocation5 + $0x20] sm:$0xff]
    %v132 = vld [vmem:[#allocation5 + $0x28] sm:$0xff]
    %v133 = vld [vmem:[#allocation5 + $0x30] sm:$0xff]
    %v134 = vld [vmem:[#allocation5 + $0x38] sm:$0xff]
    %v135 = vld [vmem:[#allocation5 + $0x40] sm:$0xff]
    %v136 = vld [vmem:[#allocation5 + $0x48] sm:$0xff]
    %v137 = vld [vmem:[#allocation5 + $0x50] sm:$0xff]
    %v138 = vld [vmem:[#allocation5 + $0x58] sm:$0xff]
    %v139 = vld [vmem:[#allocation5 + $0x60] sm:$0xff]
    %v140 = vld [vmem:[#allocation5 + $0x68] sm:$0xff]
    %v141 = vld [vmem:[#allocation5 + $0x70] sm:$0xff]
    %v142 = vld [vmem:[#allocation5 + $0x78] sm:$0xff]
    %v143 = vld [vmem:[#allocation5 + $0x80] sm:$0xff]
    %v144 = vld [vmem:[#allocation5 + $0x88] sm:$0xff]
    %v145 = vld [vmem:[#allocation5 + $0x90] sm:$0xff]
    %v146 = vld [vmem:[#allocation5 + $0x98] sm:$0xff]
    %v147 = vld [vmem:[#allocation5 + $0xa0] sm:$0xff]
    %v148 = vld [vmem:[#allocation5 + $0xa8] sm:$0xff]
    %v149 = vld [vmem:[#allocation5 + $0xb0] sm:$0xff]
    %v150 = vld [vmem:[#allocation5 + $0xb8] sm:$0xff]
    %v151 = vld [vmem:[#allocation5 + $0xc0] sm:$0xff]
    %v152 = vld [vmem:[#allocation5 + $0xc8] sm:$0xff]
    %v153 = vld [vmem:[#allocation5 + $0xd0] sm:$0xff]
    %v154 = vld [vmem:[#allocation5 + $0xd8] sm:$0xff]
    %v155 = vld [vmem:[#allocation5 + $0xe0] sm:$0xff]
    %v156 = vld [vmem:[#allocation5 + $0xe8] sm:$0xff]
    %v157 = vld [vmem:[#allocation5 + $0xf0] sm:$0xff]
    %v158 = vld [vmem:[#allocation5 + $0xf8] sm:$0xff]
    %v159 = vld [vmem:[#allocation5 + $0x100] sm:$0xff]
    %v160 = vld [vmem:[#allocation5 + $0x108] sm:$0xff]
    %v161 = vld [vmem:[#allocation5 + $0x110] sm:$0xff]
    %v162 = vld [vmem:[#allocation5 + $0x118] sm:$0xff]
    %v163 = vld [vmem:[#allocation5 + $0x120] sm:$0xff]
    %v164 = vld [vmem:[#allocation5 + $0x128] sm:$0xff]
    %v165 = vld [vmem:[#allocation5 + $0x130] sm:$0xff]
    %v166 = vld [vmem:[#allocation5 + $0x138] sm:$0xff]
    %v167 = vld [vmem:[#allocation5 + $0x140] sm:$0xff]
    %v168 = vld [vmem:[#allocation5 + $0x148] sm:$0xff]
    %v169 = vld [vmem:[#allocation5 + $0x150] sm:$0xff]
    %v170 = vld [vmem:[#allocation5 + $0x158] sm:$0xff]
    %v171 = vld [vmem:[#allocation5 + $0x160] sm:$0xff]
    %v172 = vld [vmem:[#allocation5 + $0x168] sm:$0xff]
    %v173 = vld [vmem:[#allocation5 + $0x170] sm:$0xff]
    %v174 = vld [vmem:[#allocation5 + $0x178] sm:$0xff]
    %v175 = vld [vmem:[#allocation5 + $0x180] sm:$0xff]
    %v176 = vld [vmem:[#allocation5 + $0x188] sm:$0xff]
    %v177 = vld [vmem:[#allocation5 + $0x190] sm:$0xff]
    %v178 = vld [vmem:[#allocation5 + $0x198] sm:$0xff]
    %v179 = vld [vmem:[#allocation5 + $0x1a0] sm:$0xff]
    %v180 = vld [vmem:[#allocation5 + $0x1a8] sm:$0xff]
    %v181 = vld [vmem:[#allocation5 + $0x1b0] sm:$0xff]
    %v182 = vld [vmem:[#allocation5 + $0x1b8] sm:$0xff]
    %v183 = vld [vmem:[#allocation5 + $0x1c0] sm:$0xff]
    %v184 = vld [vmem:[#allocation5 + $0x1c8] sm:$0xff]
    %v185 = vld [vmem:[#allocation5 + $0x1d0] sm:$0xff]
    %v186 = vld [vmem:[#allocation5 + $0x1d8] sm:$0xff]
    %v187 = vld [vmem:[#allocation5 + $0x1e0] sm:$0xff]
    %v188 = vld [vmem:[#allocation5 + $0x1e8] sm:$0xff]
    %v189 = vld [vmem:[#allocation5 + $0x1f0] sm:$0xff]
    %v190 = vld [vmem:[#allocation5 + $0x1f8] sm:$0xff]
    %v191 = vld [vmem:[#allocation5 + $0x200] sm:$0xff]
    %v192 = vld [vmem:[#allocation5 + $0x208] sm:$0xff]
    %v193 = vld [vmem:[#allocation5 + $0x210] sm:$0xff]
    %v194 = vld [vmem:[#allocation5 + $0x218] sm:$0xff]
    %v195 = vld [vmem:[#allocation5 + $0x220] sm:$0xff]
    %v196 = vld [vmem:[#allocation5 + $0x228] sm:$0xff]
    %v197 = vld [vmem:[#allocation5 + $0x230] sm:$0xff]
    %v198 = vld [vmem:[#allocation5 + $0x238] sm:$0xff]
    %v199 = vld [vmem:[#allocation5 + $0x240] sm:$0xff]
    %v200 = vld [vmem:[#allocation5 + $0x248] sm:$0xff]
    %v201 = vld [vmem:[#allocation5 + $0x250] sm:$0xff]
    %v202 = vld [vmem:[#allocation5 + $0x258] sm:$0xff]
    %v203 = vld [vmem:[#allocation5 + $0x260] sm:$0xff]
    %v204 = vld [vmem:[#allocation5 + $0x268] sm:$0xff]
    %v205 = vld [vmem:[#allocation5 + $0x270] sm:$0xff]
    %v206 = vld [vmem:[#allocation5 + $0x278] sm:$0xff]
    %v207 = vld [vmem:[#allocation5 + $0x280] sm:$0xff]
    %v208 = vld [vmem:[#allocation5 + $0x288] sm:$0xff]
    %v209 = vld [vmem:[#allocation5 + $0x290] sm:$0xff]
    %v210 = vld [vmem:[#allocation5 + $0x298] sm:$0xff]
    %v211 = vld [vmem:[#allocation5 + $0x2a0] sm:$0xff]
    %v212 = vld [vmem:[#allocation5 + $0x2a8] sm:$0xff]
    %v213 = vld [vmem:[#allocation5 + $0x2b0] sm:$0xff]
    %v214 = vld [vmem:[#allocation5 + $0x2b8] sm:$0xff]
    %v215 = vld [vmem:[#allocation5 + $0x2c0] sm:$0xff]
    %v216 = vld [vmem:[#allocation5 + $0x2c8] sm:$0xff]
    %v217 = vld [vmem:[#allocation5 + $0x2d0] sm:$0xff]
    %v218 = vld [vmem:[#allocation5 + $0x2d8] sm:$0xff]
    %v219 = vld [vmem:[#allocation5 + $0x2e0] sm:$0xff]
    %v220 = vld [vmem:[#allocation5 + $0x2e8] sm:$0xff]
    %v221 = vld [vmem:[#allocation5 + $0x2f0] sm:$0xff]
    %v222 = vld [vmem:[#allocation5 + $0x2f8] sm:$0xff]
    %v223 = vld [vmem:[#allocation5 + $0x300] sm:$0xff]
    %v224 = vld [vmem:[#allocation5 + $0x308] sm:$0xff]
    %v225 = vld [vmem:[#allocation5 + $0x310] sm:$0xff]
    %v226 = vld [vmem:[#allocation5 + $0x318] sm:$0xff]
    %v227 = vld [vmem:[#allocation7] sm:$0xf]
    %v229 = vlaneseq
    %v230 = vshrl.u32 %v229, 7
    %v231 = vsub.s32 0, %v230
    %v232 = vrot.slane %v227, %v231
    %v233 = vlaneseq
    %v234 = vshrl.u32 %v233, 7
    %v235 = vsub.s32 1, %v234
    %v236 = vrot.slane %v227, %v235
    %v237 = vlaneseq
    %v238 = vshrl.u32 %v237, 7
    %v239 = vsub.s32 2, %v238
    %v240 = vrot.slane %v227, %v239
    %v241 = vlaneseq
    %v242 = vshrl.u32 %v241, 7
    %v243 = vsub.s32 3, %v242
    %v244 = vrot.slane %v227, %v243
    %v349 = vunpack.c.l.b16 %v127
    %v350 = vunpack.c.h.b16 %v127
    %v351 = vunpack.c.l.b16 %v128
    %v352 = vunpack.c.h.b16 %v128
    %v353 = vunpack.c.l.b16 %v129
    %v354 = vunpack.c.h.b16 %v129
    %v355 = vunpack.c.l.b16 %v130
    %v356 = vunpack.c.h.b16 %v130
    %v357 = vunpack.c.l.b16 %v131
    %v358 = vunpack.c.h.b16 %v131
    %v359 = vunpack.c.l.b16 %v132
    %v360 = vunpack.c.h.b16 %v132
    %v361 = vunpack.c.l.b16 %v133
    %v362 = vunpack.c.h.b16 %v133
    %v363 = vunpack.c.l.b16 %v134
    %v364 = vunpack.c.h.b16 %v134
    %v365 = vunpack.c.l.b16 %v135
    %v366 = vunpack.c.h.b16 %v135
    %v367 = vunpack.c.l.b16 %v136
    %v368 = vunpack.c.h.b16 %v136
    %v369 = vunpack.c.l.b16 %v137
    %v370 = vunpack.c.h.b16 %v137
    %v371 = vunpack.c.l.b16 %v138
    %v372 = vunpack.c.h.b16 %v138
    %v373 = vunpack.c.l.b16 %v139
    %v374 = vunpack.c.h.b16 %v139
    %v375 = vunpack.c.l.b16 %v140
    %v376 = vunpack.c.h.b16 %v140
    %v377 = vunpack.c.l.b16 %v141
    %v378 = vunpack.c.h.b16 %v141
    %v379 = vunpack.c.l.b16 %v142
    %v380 = vunpack.c.h.b16 %v142
    %v381 = vunpack.c.l.b16 %v143
    %v382 = vunpack.c.h.b16 %v143
    %v383 = vunpack.c.l.b16 %v144
    %v384 = vunpack.c.h.b16 %v144
    %v385 = vunpack.c.l.b16 %v145
    %v386 = vunpack.c.h.b16 %v145
    %v387 = vunpack.c.l.b16 %v146
    %v388 = vunpack.c.h.b16 %v146
    %v389 = vunpack.c.l.b16 %v147
    %v390 = vunpack.c.h.b16 %v147
    %v391 = vunpack.c.l.b16 %v148
    %v392 = vunpack.c.h.b16 %v148
    %v393 = vunpack.c.l.b16 %v149
    %v394 = vunpack.c.h.b16 %v149
    %v395 = vunpack.c.l.b16 %v150
    %v396 = vunpack.c.h.b16 %v150
    %v397 = vunpack.c.l.b16 %v151
    %v398 = vunpack.c.h.b16 %v151
    %v399 = vunpack.c.l.b16 %v152
    %v400 = vunpack.c.h.b16 %v152
    %v401 = vunpack.c.l.b16 %v153
    %v402 = vunpack.c.h.b16 %v153
    %v403 = vunpack.c.l.b16 %v154
    %v404 = vunpack.c.h.b16 %v154
    %v405 = vunpack.c.l.b16 %v155
    %v406 = vunpack.c.h.b16 %v155
    %v407 = vunpack.c.l.b16 %v156
    %v408 = vunpack.c.h.b16 %v156
    %v409 = vunpack.c.l.b16 %v157
    %v410 = vunpack.c.h.b16 %v157
    %v411 = vunpack.c.l.b16 %v158
    %v412 = vunpack.c.h.b16 %v158
    %v413 = vunpack.c.l.b16 %v159
    %v414 = vunpack.c.h.b16 %v159
    %v415 = vunpack.c.l.b16 %v160
    %v416 = vunpack.c.h.b16 %v160
    %v417 = vunpack.c.l.b16 %v161
    %v418 = vunpack.c.h.b16 %v161
    %v419 = vunpack.c.l.b16 %v162
    %v420 = vunpack.c.h.b16 %v162
    %v421 = vunpack.c.l.b16 %v163
    %v422 = vunpack.c.h.b16 %v163
    %v423 = vunpack.c.l.b16 %v164
    %v424 = vunpack.c.h.b16 %v164
    %v425 = vunpack.c.l.b16 %v165
    %v426 = vunpack.c.h.b16 %v165
    %v427 = vunpack.c.l.b16 %v166
    %v428 = vunpack.c.h.b16 %v166
    %v429 = vunpack.c.l.b16 %v167
    %v430 = vunpack.c.h.b16 %v167
    %v431 = vunpack.c.l.b16 %v168
    %v432 = vunpack.c.h.b16 %v168
    %v433 = vunpack.c.l.b16 %v169
    %v434 = vunpack.c.h.b16 %v169
    %v435 = vunpack.c.l.b16 %v170
    %v436 = vunpack.c.h.b16 %v170
    %v437 = vunpack.c.l.b16 %v171
    %v438 = vunpack.c.h.b16 %v171
    %v439 = vunpack.c.l.b16 %v172
    %v440 = vunpack.c.h.b16 %v172
    %v441 = vunpack.c.l.b16 %v173
    %v442 = vunpack.c.h.b16 %v173
    %v443 = vunpack.c.l.b16 %v174
    %v444 = vunpack.c.h.b16 %v174
    %v445 = vunpack.c.l.b16 %v175
    %v446 = vunpack.c.h.b16 %v175
    %v447 = vunpack.c.l.b16 %v176
    %v448 = vunpack.c.h.b16 %v176
    %v449 = vunpack.c.l.b16 %v177
    %v450 = vunpack.c.h.b16 %v177
    %v451 = vunpack.c.l.b16 %v178
    %v452 = vunpack.c.h.b16 %v178
    %v453 = vunpack.c.l.b16 %v179
    %v454 = vunpack.c.h.b16 %v179
    %v455 = vunpack.c.l.b16 %v180
    %v456 = vunpack.c.h.b16 %v180
    %v457 = vunpack.c.l.b16 %v181
    %v458 = vunpack.c.h.b16 %v181
    %v459 = vunpack.c.l.b16 %v182
    %v460 = vunpack.c.h.b16 %v182
    %v461 = vunpack.c.l.b16 %v183
    %v462 = vunpack.c.h.b16 %v183
    %v463 = vunpack.c.l.b16 %v184
    %v464 = vunpack.c.h.b16 %v184
    %v465 = vunpack.c.l.b16 %v185
    %v466 = vunpack.c.h.b16 %v185
    %v467 = vunpack.c.l.b16 %v186
    %v468 = vunpack.c.h.b16 %v186
    %v469 = vunpack.c.l.b16 %v187
    %v470 = vunpack.c.h.b16 %v187
    %v471 = vunpack.c.l.b16 %v188
    %v472 = vunpack.c.h.b16 %v188
    %v473 = vunpack.c.l.b16 %v189
    %v474 = vunpack.c.h.b16 %v189
    %v475 = vunpack.c.l.b16 %v190
    %v476 = vunpack.c.h.b16 %v190
    %v477 = vunpack.c.l.b16 %v191
    %v478 = vunpack.c.h.b16 %v191
    %v479 = vunpack.c.l.b16 %v192
    %v480 = vunpack.c.h.b16 %v192
    %v481 = vunpack.c.l.b16 %v193
    %v482 = vunpack.c.h.b16 %v193
    %v483 = vunpack.c.l.b16 %v194
    %v484 = vunpack.c.h.b16 %v194
    %v485 = vunpack.c.l.b16 %v195
    %v486 = vunpack.c.h.b16 %v195
    %v487 = vunpack.c.l.b16 %v196
    %v488 = vunpack.c.h.b16 %v196
    %v489 = vunpack.c.l.b16 %v197
    %v490 = vunpack.c.h.b16 %v197
    %v491 = vunpack.c.l.b16 %v198
    %v492 = vunpack.c.h.b16 %v198
    %v493 = vunpack.c.l.b16 %v199
    %v494 = vunpack.c.h.b16 %v199
    %v495 = vunpack.c.l.b16 %v200
    %v496 = vunpack.c.h.b16 %v200
    %v497 = vunpack.c.l.b16 %v201
    %v498 = vunpack.c.h.b16 %v201
    %v499 = vunpack.c.l.b16 %v202
    %v500 = vunpack.c.h.b16 %v202
    %v501 = vunpack.c.l.b16 %v203
    %v502 = vunpack.c.h.b16 %v203
    %v503 = vunpack.c.l.b16 %v204
    %v504 = vunpack.c.h.b16 %v204
    %v505 = vunpack.c.l.b16 %v205
    %v506 = vunpack.c.h.b16 %v205
    %v507 = vunpack.c.l.b16 %v206
    %v508 = vunpack.c.h.b16 %v206
    %v509 = vunpack.c.l.b16 %v207
    %v510 = vunpack.c.h.b16 %v207
    %v511 = vunpack.c.l.b16 %v208
    %v512 = vunpack.c.h.b16 %v208
    %v513 = vunpack.c.l.b16 %v209
    %v514 = vunpack.c.h.b16 %v209
    %v515 = vunpack.c.l.b16 %v210
    %v516 = vunpack.c.h.b16 %v210
    %v517 = vunpack.c.l.b16 %v211
    %v518 = vunpack.c.h.b16 %v211
    %v519 = vunpack.c.l.b16 %v212
    %v520 = vunpack.c.h.b16 %v212
    %v521 = vunpack.c.l.b16 %v213
    %v522 = vunpack.c.h.b16 %v213
    %v523 = vunpack.c.l.b16 %v214
    %v524 = vunpack.c.h.b16 %v214
    %v525 = vunpack.c.l.b16 %v215
    %v526 = vunpack.c.h.b16 %v215
    %v527 = vunpack.c.l.b16 %v216
    %v528 = vunpack.c.h.b16 %v216
    %v529 = vunpack.c.l.b16 %v217
    %v530 = vunpack.c.h.b16 %v217
    %v531 = vunpack.c.l.b16 %v218
    %v532 = vunpack.c.h.b16 %v218
    %v533 = vunpack.c.l.b16 %v219
    %v534 = vunpack.c.h.b16 %v219
    %v535 = vunpack.c.l.b16 %v220
    %v536 = vunpack.c.h.b16 %v220
    %v537 = vunpack.c.l.b16 %v221
    %v538 = vunpack.c.h.b16 %v221
    %v539 = vunpack.c.l.b16 %v222
    %v540 = vunpack.c.h.b16 %v222
    %v541 = vunpack.c.l.b16 %v223
    %v542 = vunpack.c.h.b16 %v223
    %v543 = vunpack.c.l.b16 %v224
    %v544 = vunpack.c.h.b16 %v224
    %v545 = vunpack.c.l.b16 %v225
    %v546 = vunpack.c.h.b16 %v225
    %v547 = vunpack.c.l.b16 %v226
    %v548 = vunpack.c.h.b16 %v226
    %v549 = vpack.c.b16 %v353, %v349
    %v550 = vpack.c.b16 %v354, %v350
    %v551 = vpack.c.b16 %v355, %v351
    %v552 = vpack.c.b16 %v356, %v352
    %v553 = vpack.c.b16 %v361, %v357
    %v554 = vpack.c.b16 %v362, %v358
    %v555 = vpack.c.b16 %v363, %v359
    %v556 = vpack.c.b16 %v364, %v360
    %v557 = vpack.c.b16 %v369, %v365
    %v558 = vpack.c.b16 %v370, %v366
    %v559 = vpack.c.b16 %v371, %v367
    %v560 = vpack.c.b16 %v372, %v368
    %v561 = vpack.c.b16 %v377, %v373
    %v562 = vpack.c.b16 %v378, %v374
    %v563 = vpack.c.b16 %v379, %v375
    %v564 = vpack.c.b16 %v380, %v376
    %v565 = vpack.c.b16 %v385, %v381
    %v566 = vpack.c.b16 %v386, %v382
    %v567 = vpack.c.b16 %v387, %v383
    %v568 = vpack.c.b16 %v388, %v384
    %v569 = vpack.c.b16 %v393, %v389
    %v570 = vpack.c.b16 %v394, %v390
    %v571 = vpack.c.b16 %v395, %v391
    %v572 = vpack.c.b16 %v396, %v392
    %v573 = vpack.c.b16 %v401, %v397
    %v574 = vpack.c.b16 %v402, %v398
    %v575 = vpack.c.b16 %v403, %v399
    %v576 = vpack.c.b16 %v404, %v400
    %v577 = vpack.c.b16 %v409, %v405
    %v578 = vpack.c.b16 %v410, %v406
    %v579 = vpack.c.b16 %v411, %v407
    %v580 = vpack.c.b16 %v412, %v408
    %v581 = vpack.c.b16 %v417, %v413
    %v582 = vpack.c.b16 %v418, %v414
    %v583 = vpack.c.b16 %v419, %v415
    %v584 = vpack.c.b16 %v420, %v416
    %v585 = vpack.c.b16 %v425, %v421
    %v586 = vpack.c.b16 %v426, %v422
    %v587 = vpack.c.b16 %v427, %v423
    %v588 = vpack.c.b16 %v428, %v424
    %v589 = vpack.c.b16 %v433, %v429
    %v590 = vpack.c.b16 %v434, %v430
    %v591 = vpack.c.b16 %v435, %v431
    %v592 = vpack.c.b16 %v436, %v432
    %v593 = vpack.c.b16 %v441, %v437
    %v594 = vpack.c.b16 %v442, %v438
    %v595 = vpack.c.b16 %v443, %v439
    %v596 = vpack.c.b16 %v444, %v440
    %v597 = vpack.c.b16 %v449, %v445
    %v598 = vpack.c.b16 %v450, %v446
    %v599 = vpack.c.b16 %v451, %v447
    %v600 = vpack.c.b16 %v452, %v448
    %v601 = vpack.c.b16 %v457, %v453
    %v602 = vpack.c.b16 %v458, %v454
    %v603 = vpack.c.b16 %v459, %v455
    %v604 = vpack.c.b16 %v460, %v456
    %v605 = vpack.c.b16 %v465, %v461
    %v606 = vpack.c.b16 %v466, %v462
    %v607 = vpack.c.b16 %v467, %v463
    %v608 = vpack.c.b16 %v468, %v464
    %v609 = vpack.c.b16 %v473, %v469
    %v610 = vpack.c.b16 %v474, %v470
    %v611 = vpack.c.b16 %v475, %v471
    %v612 = vpack.c.b16 %v476, %v472
    %v613 = vpack.c.b16 %v481, %v477
    %v614 = vpack.c.b16 %v482, %v478
    %v615 = vpack.c.b16 %v483, %v479
    %v616 = vpack.c.b16 %v484, %v480
    %v617 = vpack.c.b16 %v489, %v485
    %v618 = vpack.c.b16 %v490, %v486
    %v619 = vpack.c.b16 %v491, %v487
    %v620 = vpack.c.b16 %v492, %v488
    %v621 = vpack.c.b16 %v497, %v493
    %v622 = vpack.c.b16 %v498, %v494
    %v623 = vpack.c.b16 %v499, %v495
    %v624 = vpack.c.b16 %v500, %v496
    %v625 = vpack.c.b16 %v505, %v501
    %v626 = vpack.c.b16 %v506, %v502
    %v627 = vpack.c.b16 %v507, %v503
    %v628 = vpack.c.b16 %v508, %v504
    %v629 = vpack.c.b16 %v513, %v509
    %v630 = vpack.c.b16 %v514, %v510
    %v631 = vpack.c.b16 %v515, %v511
    %v632 = vpack.c.b16 %v516, %v512
    %v633 = vpack.c.b16 %v521, %v517
    %v634 = vpack.c.b16 %v522, %v518
    %v635 = vpack.c.b16 %v523, %v519
    %v636 = vpack.c.b16 %v524, %v520
    %v637 = vpack.c.b16 %v529, %v525
    %v638 = vpack.c.b16 %v530, %v526
    %v639 = vpack.c.b16 %v531, %v527
    %v640 = vpack.c.b16 %v532, %v528
    %v641 = vpack.c.b16 %v537, %v533
    %v642 = vpack.c.b16 %v538, %v534
    %v643 = vpack.c.b16 %v539, %v535
    %v644 = vpack.c.b16 %v540, %v536
    %v645 = vpack.c.b16 %v545, %v541
    %v646 = vpack.c.b16 %v546, %v542
    %v647 = vpack.c.b16 %v547, %v543
    %v648 = vpack.c.b16 %v548, %v544
    %vm749 = vcmask 130048
    %v751 = vsel %vm749, %v126, 0
    %753 = vmatprep.subr.bf16.mxu0 %v578
    %754 = vmatpush1.bf16.msra.mxu0 %v577
    %755 = vmatprep.subr.bf16.mxu0 %v574
    %756 = vmatpush1.bf16.msra.mxu0 %v573
    %757 = vmatprep.subr.bf16.mxu0 %v570
    %758 = vmatpush1.bf16.msra.mxu0 %v569
    %759 = vmatprep.subr.bf16.mxu0 %v566
    %760 = vmatpush1.bf16.msra.mxu0 %v565
    %761 = vmatprep.subr.bf16.mxu0 %v562
    %762 = vmatpush1.bf16.msra.mxu0 %v561
    %763 = vmatprep.subr.bf16.mxu0 %v558
    %764 = vmatpush1.bf16.msra.mxu0 %v557
    %765 = vmatprep.subr.bf16.mxu0 %v554
    %766 = vmatpush1.bf16.msra.mxu0 %v553
    %767 = vmatprep.subr.bf16.mxu0 %v550
    %768 = vmatpush1.bf16.msra.mxu0 %v549
    %769 = vmatprep.subr.bf16.mxu0 %v610
    %770 = vmatpush2.bf16.msra.mxu0 %v609
    %771 = vmatprep.subr.bf16.mxu0 %v606
    %772 = vmatpush2.bf16.msra.mxu0 %v605
    %773 = vmatprep.subr.bf16.mxu0 %v602
    %774 = vmatpush2.bf16.msra.mxu0 %v601
    %775 = vmatprep.subr.bf16.mxu0 %v598
    %776 = vmatpush2.bf16.msra.mxu0 %v597
    %777 = vmatprep.subr.bf16.mxu0 %v594
    %778 = vmatpush2.bf16.msra.mxu0 %v593
    %779 = vmatprep.subr.bf16.mxu0 %v590
    %780 = vmatpush2.bf16.msra.mxu0 %v589
    %781 = vmatprep.subr.bf16.mxu0 %v586
    %782 = vmatpush2.bf16.msra.mxu0 %v585
    %783 = vmatprep.subr.bf16.mxu0 %v582
    %784 = vmatpush2.bf16.msra.mxu0 %v581
    %785 = vmatprep.mubr.bf16.mxu0 %v124
    %786 = vmatmul.mubr.bf16.gmra.mxu0 %v123
    %v787 = vpop.f32.mrf.mxu0
    %v788 = vadd.f32 %v232, %v787
    %v789 = vpop.f32.mrf.mxu0
    %v790 = vadd.f32 %v236, %v789
    %v791 = vpop.f32.mrf.mxu0
    %v792 = vpop.f32.mrf.mxu0
    %793 = vdwg.mxu0
    %794 = vmatprep.subr.bf16.mxu0 %v642
    %795 = vmatpush1.bf16.msra.mxu0 %v641
    %796 = vmatprep.subr.bf16.mxu0 %v638
    %797 = vmatpush1.bf16.msra.mxu0 %v637
    %798 = vmatprep.subr.bf16.mxu0 %v634
    %799 = vmatpush1.bf16.msra.mxu0 %v633
    %800 = vmatprep.subr.bf16.mxu0 %v630
    %801 = vmatpush1.bf16.msra.mxu0 %v629
    %802 = vmatprep.subr.bf16.mxu0 %v626
    %803 = vmatpush1.bf16.msra.mxu0 %v625
    %804 = vmatprep.subr.bf16.mxu0 %v622
    %805 = vmatpush1.bf16.msra.mxu0 %v621
    %806 = vmatprep.subr.bf16.mxu0 %v618
    %807 = vmatpush1.bf16.msra.mxu0 %v617
    %808 = vmatprep.subr.bf16.mxu0 %v614
    %809 = vmatpush1.bf16.msra.mxu0 %v613
    %810 = vmatprep.subr.bf16.mxu0 0
    %811 = vmatpush2.bf16.msra.mxu0 0
    %812 = vmatprep.subr.bf16.mxu0 0
    %813 = vmatpush2.bf16.msra.mxu0 0
    %814 = vmatprep.subr.bf16.mxu0 0
    %815 = vmatpush2.bf16.msra.mxu0 0
    %816 = vmatprep.subr.bf16.mxu0 0
    %817 = vmatpush2.bf16.msra.mxu0 0
    %818 = vmatprep.subr.bf16.mxu0 0
    %819 = vmatpush2.bf16.msra.mxu0 0
    %820 = vmatprep.subr.bf16.mxu0 0
    %821 = vmatpush2.bf16.msra.mxu0 0
    %822 = vmatprep.subr.bf16.mxu0 0
    %823 = vmatpush2.bf16.msra.mxu0 0
    %824 = vmatprep.subr.bf16.mxu0 %v646
    %825 = vmatpush2.bf16.msra.mxu0 %v645
    %826 = vmatprep.mubr.bf16.mxu0 %v751
    %827 = vmatmul.mubr.bf16.gmra.mxu0 %v125
    %v828 = vpop.f32.mrf.mxu0
    %v829 = vadd.f32 %v788, %v828
    %v830 = vpop.f32.mrf.mxu0
    %v831 = vadd.f32 %v790, %v830
    %v832 = vpop.f32.mrf.mxu0
    %v833 = vpop.f32.mrf.mxu0
    %834 = vdwg.mxu0
    %835 = vmatprep.subr.bf16.mxu0 %v580
    %836 = vmatpush1.bf16.msra.mxu0 %v579
    %837 = vmatprep.subr.bf16.mxu0 %v576
    %838 = vmatpush1.bf16.msra.mxu0 %v575
    %839 = vmatprep.subr.bf16.mxu0 %v572
    %840 = vmatpush1.bf16.msra.mxu0 %v571
    %841 = vmatprep.subr.bf16.mxu0 %v568
    %842 = vmatpush1.bf16.msra.mxu0 %v567
    %843 = vmatprep.subr.bf16.mxu0 %v564
    %844 = vmatpush1.bf16.msra.mxu0 %v563
    %845 = vmatprep.subr.bf16.mxu0 %v560
    %846 = vmatpush1.bf16.msra.mxu0 %v559
    %847 = vmatprep.subr.bf16.mxu0 %v556
    %848 = vmatpush1.bf16.msra.mxu0 %v555
    %849 = vmatprep.subr.bf16.mxu0 %v552
    %850 = vmatpush1.bf16.msra.mxu0 %v551
    %851 = vmatprep.subr.bf16.mxu0 %v612
    %852 = vmatpush2.bf16.msra.mxu0 %v611
    %853 = vmatprep.subr.bf16.mxu0 %v608
    %854 = vmatpush2.bf16.msra.mxu0 %v607
    %855 = vmatprep.subr.bf16.mxu0 %v604
    %856 = vmatpush2.bf16.msra.mxu0 %v603
    %857 = vmatprep.subr.bf16.mxu0 %v600
    %858 = vmatpush2.bf16.msra.mxu0 %v599
    %859 = vmatprep.subr.bf16.mxu0 %v596
    %860 = vmatpush2.bf16.msra.mxu0 %v595
    %861 = vmatprep.subr.bf16.mxu0 %v592
    %862 = vmatpush2.bf16.msra.mxu0 %v591
    %863 = vmatprep.subr.bf16.mxu0 %v588
    %864 = vmatpush2.bf16.msra.mxu0 %v587
    %865 = vmatprep.subr.bf16.mxu0 %v584
    %866 = vmatpush2.bf16.msra.mxu0 %v583
    %867 = vmatprep.mubr.bf16.mxu0 %v124
    %868 = vmatmul.mubr.bf16.gmra.mxu0 %v123
    %v869 = vpop.f32.mrf.mxu0
    %v870 = vadd.f32 %v240, %v869
    %v871 = vpop.f32.mrf.mxu0
    %v872 = vadd.f32 %v244, %v871
    %v873 = vpop.f32.mrf.mxu0
    %v874 = vpop.f32.mrf.mxu0
    %875 = vdwg.mxu0
    %876 = vmatprep.subr.bf16.mxu0 %v644
    %877 = vmatpush1.bf16.msra.mxu0 %v643
    %878 = vmatprep.subr.bf16.mxu0 %v640
    %879 = vmatpush1.bf16.msra.mxu0 %v639
    %880 = vmatprep.subr.bf16.mxu0 %v636
    %881 = vmatpush1.bf16.msra.mxu0 %v635
    %882 = vmatprep.subr.bf16.mxu0 %v632
    %883 = vmatpush1.bf16.msra.mxu0 %v631
    %884 = vmatprep.subr.bf16.mxu0 %v628
    %885 = vmatpush1.bf16.msra.mxu0 %v627
    %886 = vmatprep.subr.bf16.mxu0 %v624
    %887 = vmatpush1.bf16.msra.mxu0 %v623
    %888 = vmatprep.subr.bf16.mxu0 %v620
    %889 = vmatpush1.bf16.msra.mxu0 %v619
    %890 = vmatprep.subr.bf16.mxu0 %v616
    %891 = vmatpush1.bf16.msra.mxu0 %v615
    %892 = vmatprep.subr.bf16.mxu0 0
    %893 = vmatpush2.bf16.msra.mxu0 0
    %894 = vmatprep.subr.bf16.mxu0 0
    %895 = vmatpush2.bf16.msra.mxu0 0
    %896 = vmatprep.subr.bf16.mxu0 0
    %897 = vmatpush2.bf16.msra.mxu0 0
    %898 = vmatprep.subr.bf16.mxu0 0
    %899 = vmatpush2.bf16.msra.mxu0 0
    %900 = vmatprep.subr.bf16.mxu0 0
    %901 = vmatpush2.bf16.msra.mxu0 0
    %902 = vmatprep.subr.bf16.mxu0 0
    %903 = vmatpush2.bf16.msra.mxu0 0
    %904 = vmatprep.subr.bf16.mxu0 0
    %905 = vmatpush2.bf16.msra.mxu0 0
    %906 = vmatprep.subr.bf16.mxu0 %v648
    %907 = vmatpush2.bf16.msra.mxu0 %v647
    %908 = vmatprep.mubr.bf16.mxu0 %v751
    %909 = vmatmul.mubr.bf16.gmra.mxu0 %v125
    %v910 = vpop.f32.mrf.mxu0
    %v911 = vadd.f32 %v870, %v910
    %v912 = vpop.f32.mrf.mxu0
    %v913 = vadd.f32 %v872, %v912
    %v914 = vpop.f32.mrf.mxu0
    %v915 = vpop.f32.mrf.mxu0
    %916 = vdwg.mxu0
    %v917 = vmax.f32 %v829, 0.0
    %v918 = vmax.f32 %v831, 0.0
    %v919 = vmax.f32 %v911, 0.0
    %v920 = vmax.f32 %v913, 0.0
    %v921 = vpack.c.bf16 %v917, %v917
    %v922 = vpack.c.bf16 %v918, %v918
    %v923 = vpack.c.bf16 %v919, %v919
    %v924 = vpack.c.bf16 %v920, %v920
    %v925 = vld [vmem:[#allocation8] sm:$0xf]
    %v926 = vld [vmem:[#allocation8 + $0x4] sm:$0xf]
    %v927 = vld [vmem:[#allocation8 + $0x8] sm:$0xf]
    %v928 = vld [vmem:[#allocation8 + $0xc] sm:$0xf]
    %v929 = vld [vmem:[#allocation8 + $0x10] sm:$0xf]
    %v930 = vld [vmem:[#allocation8 + $0x14] sm:$0xf]
    %v931 = vld [vmem:[#allocation8 + $0x18] sm:$0xf]
    %v932 = vld [vmem:[#allocation8 + $0x1c] sm:$0xf]
    %v933 = vld [vmem:[#allocation8 + $0x20] sm:$0xf]
    %v934 = vld [vmem:[#allocation8 + $0x24] sm:$0xf]
    %v935 = vld [vmem:[#allocation8 + $0x28] sm:$0xf]
    %v936 = vld [vmem:[#allocation8 + $0x2c] sm:$0xf]
    %v937 = vld [vmem:[#allocation8 + $0x30] sm:$0xf]
    %v938 = vld [vmem:[#allocation8 + $0x34] sm:$0xf]
    %v939 = vld [vmem:[#allocation8 + $0x38] sm:$0xf]
    %v940 = vld [vmem:[#allocation8 + $0x3c] sm:$0xf]
    %v941 = vld [vmem:[#allocation8 + $0x40] sm:$0xf]
    %v942 = vld [vmem:[#allocation8 + $0x44] sm:$0xf]
    %v943 = vld [vmem:[#allocation8 + $0x48] sm:$0xf]
    %v944 = vld [vmem:[#allocation8 + $0x4c] sm:$0xf]
    %v945 = vld [vmem:[#allocation8 + $0x50] sm:$0xf]
    %v946 = vld [vmem:[#allocation8 + $0x54] sm:$0xf]
    %v947 = vld [vmem:[#allocation8 + $0x58] sm:$0xf]
    %v948 = vld [vmem:[#allocation8 + $0x5c] sm:$0xf]
    %v949 = vld [vmem:[#allocation8 + $0x60] sm:$0xf]
    %v950 = vld [vmem:[#allocation8 + $0x64] sm:$0xf]
    %v951 = vld [vmem:[#allocation8 + $0x68] sm:$0xf]
    %v952 = vld [vmem:[#allocation8 + $0x6c] sm:$0xf]
    %v953 = vld [vmem:[#allocation8 + $0x70] sm:$0xf]
    %v954 = vld [vmem:[#allocation8 + $0x74] sm:$0xf]
    %v955 = vld [vmem:[#allocation8 + $0x78] sm:$0xf]
    %v956 = vld [vmem:[#allocation8 + $0x7c] sm:$0xf]
    %v957 = vld [vmem:[#allocation8 + $0x80] sm:$0xf]
    %v958 = vld [vmem:[#allocation8 + $0x84] sm:$0xf]
    %v959 = vld [vmem:[#allocation8 + $0x88] sm:$0xf]
    %v960 = vld [vmem:[#allocation8 + $0x8c] sm:$0xf]
    %v961 = vld [vmem:[#allocation8 + $0x90] sm:$0xf]
    %v962 = vld [vmem:[#allocation8 + $0x94] sm:$0xf]
    %v963 = vld [vmem:[#allocation8 + $0x98] sm:$0xf]
    %v964 = vld [vmem:[#allocation8 + $0x9c] sm:$0xf]
    %v965 = vld [vmem:[#allocation8 + $0xa0] sm:$0xf]
    %v966 = vld [vmem:[#allocation8 + $0xa4] sm:$0xf]
    %v967 = vld [vmem:[#allocation8 + $0xa8] sm:$0xf]
    %v968 = vld [vmem:[#allocation8 + $0xac] sm:$0xf]
    %v969 = vld [vmem:[#allocation8 + $0xb0] sm:$0xf]
    %v970 = vld [vmem:[#allocation8 + $0xb4] sm:$0xf]
    %v971 = vld [vmem:[#allocation8 + $0xb8] sm:$0xf]
    %v972 = vld [vmem:[#allocation8 + $0xbc] sm:$0xf]
    %v973 = vld [vmem:[#allocation8 + $0xc0] sm:$0xf]
    %v974 = vld [vmem:[#allocation8 + $0xc4] sm:$0xf]
    %v975 = vld [vmem:[#allocation8 + $0xc8] sm:$0xf]
    %v976 = vld [vmem:[#allocation8 + $0xcc] sm:$0xf]
    %v977 = vld [vmem:[#allocation8 + $0xd0] sm:$0xf]
    %v978 = vld [vmem:[#allocation8 + $0xd4] sm:$0xf]
    %v979 = vld [vmem:[#allocation8 + $0xd8] sm:$0xf]
    %v980 = vld [vmem:[#allocation8 + $0xdc] sm:$0xf]
    %v981 = vld [vmem:[#allocation8 + $0xe0] sm:$0xf]
    %v982 = vld [vmem:[#allocation8 + $0xe4] sm:$0xf]
    %v983 = vld [vmem:[#allocation8 + $0xe8] sm:$0xf]
    %v984 = vld [vmem:[#allocation8 + $0xec] sm:$0xf]
    %v985 = vld [vmem:[#allocation8 + $0xf0] sm:$0xf]
    %v986 = vld [vmem:[#allocation8 + $0xf4] sm:$0xf]
    %v987 = vld [vmem:[#allocation8 + $0xf8] sm:$0xf]
    %v988 = vld [vmem:[#allocation8 + $0xfc] sm:$0xf]
    %v989 = vld [vmem:[%s4] sm:$0x1]
    %v991 = vlaneseq
    %v992 = vshrl.u32 %v991, 7
    %v993 = vsub.s32 0, %v992
    %v994 = vrot.slane %v989, %v993
    %v1060 = vunpack.c.l.b16 %v925
    %v1061 = vunpack.c.l.b16 %v926
    %v1062 = vunpack.c.l.b16 %v927
    %v1063 = vunpack.c.l.b16 %v928
    %v1064 = vunpack.c.l.b16 %v929
    %v1065 = vunpack.c.l.b16 %v930
    %v1066 = vunpack.c.l.b16 %v931
    %v1067 = vunpack.c.l.b16 %v932
    %v1068 = vunpack.c.l.b16 %v933
    %v1069 = vunpack.c.l.b16 %v934
    %v1070 = vunpack.c.l.b16 %v935
    %v1071 = vunpack.c.l.b16 %v936
    %v1072 = vunpack.c.l.b16 %v937
    %v1073 = vunpack.c.l.b16 %v938
    %v1074 = vunpack.c.l.b16 %v939
    %v1075 = vunpack.c.l.b16 %v940
    %v1076 = vunpack.c.l.b16 %v941
    %v1077 = vunpack.c.l.b16 %v942
    %v1078 = vunpack.c.l.b16 %v943
    %v1079 = vunpack.c.l.b16 %v944
    %v1080 = vunpack.c.l.b16 %v945
    %v1081 = vunpack.c.l.b16 %v946
    %v1082 = vunpack.c.l.b16 %v947
    %v1083 = vunpack.c.l.b16 %v948
    %v1084 = vunpack.c.l.b16 %v949
    %v1085 = vunpack.c.l.b16 %v950
    %v1086 = vunpack.c.l.b16 %v951
    %v1087 = vunpack.c.l.b16 %v952
    %v1088 = vunpack.c.l.b16 %v953
    %v1089 = vunpack.c.l.b16 %v954
    %v1090 = vunpack.c.l.b16 %v955
    %v1091 = vunpack.c.l.b16 %v956
    %v1092 = vunpack.c.l.b16 %v957
    %v1093 = vunpack.c.l.b16 %v958
    %v1094 = vunpack.c.l.b16 %v959
    %v1095 = vunpack.c.l.b16 %v960
    %v1096 = vunpack.c.l.b16 %v961
    %v1097 = vunpack.c.l.b16 %v962
    %v1098 = vunpack.c.l.b16 %v963
    %v1099 = vunpack.c.l.b16 %v964
    %v1100 = vunpack.c.l.b16 %v965
    %v1101 = vunpack.c.l.b16 %v966
    %v1102 = vunpack.c.l.b16 %v967
    %v1103 = vunpack.c.l.b16 %v968
    %v1104 = vunpack.c.l.b16 %v969
    %v1105 = vunpack.c.l.b16 %v970
    %v1106 = vunpack.c.l.b16 %v971
    %v1107 = vunpack.c.l.b16 %v972
    %v1108 = vunpack.c.l.b16 %v973
    %v1109 = vunpack.c.l.b16 %v974
    %v1110 = vunpack.c.l.b16 %v975
    %v1111 = vunpack.c.l.b16 %v976
    %v1112 = vunpack.c.l.b16 %v977
    %v1113 = vunpack.c.l.b16 %v978
    %v1114 = vunpack.c.l.b16 %v979
    %v1115 = vunpack.c.l.b16 %v980
    %v1116 = vunpack.c.l.b16 %v981
    %v1117 = vunpack.c.l.b16 %v982
    %v1118 = vunpack.c.l.b16 %v983
    %v1119 = vunpack.c.l.b16 %v984
    %v1120 = vunpack.c.l.b16 %v985
    %v1121 = vunpack.c.l.b16 %v986
    %v1122 = vunpack.c.l.b16 %v987
    %v1123 = vunpack.c.l.b16 %v988
    %v1124 = vpack.c.b16 %v1061, %v1060
    %v1125 = vpack.c.b16 %v1063, %v1062
    %v1126 = vpack.c.b16 %v1065, %v1064
    %v1127 = vpack.c.b16 %v1067, %v1066
    %v1128 = vpack.c.b16 %v1069, %v1068
    %v1129 = vpack.c.b16 %v1071, %v1070
    %v1130 = vpack.c.b16 %v1073, %v1072
    %v1131 = vpack.c.b16 %v1075, %v1074
    %v1132 = vpack.c.b16 %v1077, %v1076
    %v1133 = vpack.c.b16 %v1079, %v1078
    %v1134 = vpack.c.b16 %v1081, %v1080
    %v1135 = vpack.c.b16 %v1083, %v1082
    %v1136 = vpack.c.b16 %v1085, %v1084
    %v1137 = vpack.c.b16 %v1087, %v1086
    %v1138 = vpack.c.b16 %v1089, %v1088
    %v1139 = vpack.c.b16 %v1091, %v1090
    %v1140 = vpack.c.b16 %v1093, %v1092
    %v1141 = vpack.c.b16 %v1095, %v1094
    %v1142 = vpack.c.b16 %v1097, %v1096
    %v1143 = vpack.c.b16 %v1099, %v1098
    %v1144 = vpack.c.b16 %v1101, %v1100
    %v1145 = vpack.c.b16 %v1103, %v1102
    %v1146 = vpack.c.b16 %v1105, %v1104
    %v1147 = vpack.c.b16 %v1107, %v1106
    %v1148 = vpack.c.b16 %v1109, %v1108
    %v1149 = vpack.c.b16 %v1111, %v1110
    %v1150 = vpack.c.b16 %v1113, %v1112
    %v1151 = vpack.c.b16 %v1115, %v1114
    %v1152 = vpack.c.b16 %v1117, %v1116
    %v1153 = vpack.c.b16 %v1119, %v1118
    %v1154 = vpack.c.b16 %v1121, %v1120
    %v1155 = vpack.c.b16 %v1123, %v1122
    %1188 = vmatprep.subr.bf16.mxu0 0
    %1189 = vmatpush1.bf16.msra.mxu0 %v1131
    %1190 = vmatprep.subr.bf16.mxu0 0
    %1191 = vmatpush1.bf16.msra.mxu0 %v1130
    %1192 = vmatprep.subr.bf16.mxu0 0
    %1193 = vmatpush1.bf16.msra.mxu0 %v1129
    %1194 = vmatprep.subr.bf16.mxu0 0
    %1195 = vmatpush1.bf16.msra.mxu0 %v1128
    %1196 = vmatprep.subr.bf16.mxu0 0
    %1197 = vmatpush1.bf16.msra.mxu0 %v1127
    %1198 = vmatprep.subr.bf16.mxu0 0
    %1199 = vmatpush1.bf16.msra.mxu0 %v1126
    %1200 = vmatprep.subr.bf16.mxu0 0
    %1201 = vmatpush1.bf16.msra.mxu0 %v1125
    %1202 = vmatprep.subr.bf16.mxu0 0
    %1203 = vmatpush1.bf16.msra.mxu0 %v1124
    %1204 = vmatprep.subr.bf16.mxu0 0
    %1205 = vmatpush2.bf16.msra.mxu0 %v1139
    %1206 = vmatprep.subr.bf16.mxu0 0
    %1207 = vmatpush2.bf16.msra.mxu0 %v1138
    %1208 = vmatprep.subr.bf16.mxu0 0
    %1209 = vmatpush2.bf16.msra.mxu0 %v1137
    %1210 = vmatprep.subr.bf16.mxu0 0
    %1211 = vmatpush2.bf16.msra.mxu0 %v1136
    %1212 = vmatprep.subr.bf16.mxu0 0
    %1213 = vmatpush2.bf16.msra.mxu0 %v1135
    %1214 = vmatprep.subr.bf16.mxu0 0
    %1215 = vmatpush2.bf16.msra.mxu0 %v1134
    %1216 = vmatprep.subr.bf16.mxu0 0
    %1217 = vmatpush2.bf16.msra.mxu0 %v1133
    %1218 = vmatprep.subr.bf16.mxu0 0
    %1219 = vmatpush2.bf16.msra.mxu0 %v1132
    %1220 = vmatprep.mubr.bf16.mxu0 %v922
    %1221 = vmatmul.mubr.bf16.gmra.mxu0 %v921
    %v1222 = vpop.f32.mrf.mxu0
    %v1223 = vadd.f32 %v994, %v1222
    %v1224 = vpop.f32.mrf.mxu0
    %v1225 = vpop.f32.mrf.mxu0
    %v1226 = vpop.f32.mrf.mxu0
    %1227 = vdwg.mxu0
    %1228 = vmatprep.subr.bf16.mxu0 0
    %1229 = vmatpush1.bf16.msra.mxu0 %v1147
    %1230 = vmatprep.subr.bf16.mxu0 0
    %1231 = vmatpush1.bf16.msra.mxu0 %v1146
    %1232 = vmatprep.subr.bf16.mxu0 0
    %1233 = vmatpush1.bf16.msra.mxu0 %v1145
    %1234 = vmatprep.subr.bf16.mxu0 0
    %1235 = vmatpush1.bf16.msra.mxu0 %v1144
    %1236 = vmatprep.subr.bf16.mxu0 0
    %1237 = vmatpush1.bf16.msra.mxu0 %v1143
    %1238 = vmatprep.subr.bf16.mxu0 0
    %1239 = vmatpush1.bf16.msra.mxu0 %v1142
    %1240 = vmatprep.subr.bf16.mxu0 0
    %1241 = vmatpush1.bf16.msra.mxu0 %v1141
    %1242 = vmatprep.subr.bf16.mxu0 0
    %1243 = vmatpush1.bf16.msra.mxu0 %v1140
    %1244 = vmatprep.subr.bf16.mxu0 0
    %1245 = vmatpush2.bf16.msra.mxu0 %v1155
    %1246 = vmatprep.subr.bf16.mxu0 0
    %1247 = vmatpush2.bf16.msra.mxu0 %v1154
    %1248 = vmatprep.subr.bf16.mxu0 0
    %1249 = vmatpush2.bf16.msra.mxu0 %v1153
    %1250 = vmatprep.subr.bf16.mxu0 0
    %1251 = vmatpush2.bf16.msra.mxu0 %v1152
    %1252 = vmatprep.subr.bf16.mxu0 0
    %1253 = vmatpush2.bf16.msra.mxu0 %v1151
    %1254 = vmatprep.subr.bf16.mxu0 0
    %1255 = vmatpush2.bf16.msra.mxu0 %v1150
    %1256 = vmatprep.subr.bf16.mxu0 0
    %1257 = vmatpush2.bf16.msra.mxu0 %v1149
    %1258 = vmatprep.subr.bf16.mxu0 0
    %1259 = vmatpush2.bf16.msra.mxu0 %v1148
    %1260 = vmatprep.mubr.bf16.mxu0 %v924
    %1261 = vmatmul.mubr.bf16.gmra.mxu0 %v923
    %v1262 = vpop.f32.mrf.mxu0
    %v1263 = vadd.f32 %v1223, %v1262
    %v1264 = vpop.f32.mrf.mxu0
    %v1265 = vpop.f32.mrf.mxu0
    %v1266 = vpop.f32.mrf.mxu0
    %1267 = vdwg.mxu0
    %1268 = vst [vmem:[#allocation10] sm:$0xff] %v1263
    // Predicated region
    $region38: #{tpu_custom_call.1} parent=1 // pred_check
      _
    $region39: #{tpu_custom_call.1} parent=1 // pred_check_branch
      %1270 = sbr.rel (0) target = $region41
    $region40: #{tpu_custom_call.1} parent=1 // pred_region
      %s1272 = ssub.s32 128, 32
      %1273 = vsyncadd [#allocation4], %s1272
      %s1274 = sshll.u32 [#allocation10], 4
      %s1275 = int_to_ptr.vmem [resolvable:$true] %s1274
      %1280 = dma.vmem_to_hbm [thread:$0]  %s1275, 32, %s5, [#allocation4], 32, 32, 2
    $region41: #{tpu_custom_call.1} parent=1 // pred_fallthru
      _
    // Predicated region
    $region42: #{tpu_custom_call.1} parent=1 // pred_check
      _
    $region43: #{tpu_custom_call.1} parent=1 // pred_check_branch
      %1282 = sbr.rel (0) target = $region45
    $region44: #{tpu_custom_call.1} parent=1 // pred_region
      %1283 = dma.done [#allocation4], 128
    $region45: #{tpu_custom_call.1} parent=1 // pred_fallthru
      _
    %1284 = vsyncpa [#allocation3], 1
    %1285 = vsyncpa [#allocation6], 1
    %1286 = vsyncpa [#allocation9], 1
    %1287 = vsyncpa [#allocation4], 1

</llo_original>
